<compile_context>
chip_gen: v5e
topology: v5e:2x2
jax: 0.10.0
libtpu: 0.0.40
codegen_flags: <defaults>
</compile_context>

<pallas_src>
import math
import numpy as np
import jax
import jax.numpy as jnp
from jax.experimental import pallas as pl
from jax.experimental.pallas import tpu as pltpu

NUM_HEADS = 4
LN_EPS = 1e-5
PACK_LANES = 128


def _pack_weights(named):
    """Stack 2-D f32 tensors into one (rows, 128) buffer at 8-row-aligned offsets."""
    offs, rows = {}, 0
    for name, a in named.items():
        offs[name] = rows
        rows += -(-a.shape[0] // 8) * 8          # round up to sublane multiple
    buf = jnp.zeros((rows, PACK_LANES), jnp.float32)
    for name, a in named.items():
        r0 = offs[name]
        buf = buf.at[r0:r0 + a.shape[0], :a.shape[1]].set(a.astype(jnp.float32))
    return buf, offs


def geographic_embedding_forward(region_ids, text_embeddings, params, *,
                                 compute_dtype=jnp.float32):
    """GeographicEmbedding.forward as a single-step Pallas kernel."""
    B, S, H = text_embeddings.shape
    E = params['emb_table'].shape[1]
    hd = H // NUM_HEADS
    scale = 1.0 / math.sqrt(hd)

    # Embedding lookup: tiny (B, E) gather, left to XLA glue.
    region_emb = params['emb_table'][region_ids]               # (B, E)

    # ---- one-time wrapper-side weight pre-composition ----
    # Fold LayerNorm affine into region_to_hidden, then fold region_to_hidden into the
    # attention q in-projection, and fold the 1/sqrt(head_dim) scale.
    wr_ln = params['wr'] * params['ln_g'].reshape(E, 1)        # diag(ln_g) @ wr
    br_ln = params['ln_b'] @ params['wr'] + params['br']       # (1, H)
    wq_c = (wr_ln @ params['wq']) * scale                      # (E, H)
    bq_c = (br_ln @ params['wq'] + params['bq']) * scale       # (1, H)

    # Fused K/V in-projection weights.
    wkv = jnp.concatenate([params['wk'], params['wv']], axis=1)   # (H, 2H)
    bkv = jnp.concatenate([params['bk'], params['bv']], axis=1)   # (1, 2H)

    # Head-selection 0/1 mask, hoisted out of the kernel.
    col = np.arange(H)[None, :]
    row = np.arange(NUM_HEADS)[:, None]
    msel = jnp.asarray(((col >= row * hd) & (col < (row + 1) * hd)).astype(np.float32))

    pack, o = _pack_weights(dict(
        w1=params['w1'], b1=params['b1'], w2=params['w2'], b2=params['b2'],
        wq=wq_c, bq=bq_c, wkv=wkv, bkv=bkv, wo=params['wo'], bo=params['bo'],
        msel=msel))

    def kernel(region_ref, text_ref, pack_ref, out_ref):
        cd = lambda a: a.astype(compute_dtype)                 # matmul-operand dtype

        # Static, sublane-aligned views into the packed weight buffer (free views).
        w1 = pack_ref[o['w1']:o['w1'] + E, 0:2 * E]
        b1 = pack_ref[o['b1']:o['b1'] + 1, 0:2 * E]
        w2 = pack_ref[o['w2']:o['w2'] + 2 * E, 0:E]
        b2 = pack_ref[o['b2']:o['b2'] + 1, 0:E]
        wq = pack_ref[o['wq']:o['wq'] + E, 0:H]
        bq = pack_ref[o['bq']:o['bq'] + 1, 0:H]
        wkv_ = pack_ref[o['wkv']:o['wkv'] + H, 0:2 * H]
        bkv_ = pack_ref[o['bkv']:o['bkv'] + 1, 0:2 * H]
        wo = pack_ref[o['wo']:o['wo'] + H, 0:H]
        bo = pack_ref[o['bo']:o['bo'] + 1, 0:H]
        ms = pack_ref[o['msel']:o['msel'] + NUM_HEADS, 0:H]

        x = region_ref[...]                                    # (B, E)
        text = text_ref[...]                                   # (B, S, H)

        # --- geographic_processor: Linear -> ReLU -> [Dropout] -> Linear -> LayerNorm
        # (LayerNorm affine is folded into wq/bq downstream, only normalization here.)
        h = jnp.dot(cd(x), cd(w1), preferred_element_type=jnp.float32) + b1
        h = jnp.maximum(h, 0.0)
        y = jnp.dot(cd(h), cd(w2), preferred_element_type=jnp.float32) + b2
        mu = jnp.mean(y, axis=-1, keepdims=True)
        var = jnp.mean(jnp.square(y - mu), axis=-1, keepdims=True)
        norm = (y - mu) * jax.lax.rsqrt(var + LN_EPS)          # (B, E)

        # --- composed LN-affine @ region_to_hidden @ Wq (pre-scaled): single query per row.
        qp = jnp.dot(cd(norm), cd(wq), preferred_element_type=jnp.float32) + bq   # (B, H)

        # --- fused K/V projection over the whole (B*S, H) slab (one MXU matmul).
        text2 = text.reshape(B * S, H)
        kv = jnp.dot(cd(text2), cd(wkv_), preferred_element_type=jnp.float32) + bkv_
        kp = kv[:, :H].reshape(B, S, H)
        vp = kv[:, H:].reshape(B, S, H)

        # --- head-batched single-query attention (exact 0/1 masking, no per-head loop).
        qw = qp[:, None, :] * ms[None, :, :]                   # (B, NH, H)
        scores = jnp.einsum('bnh,bsh->bns', cd(qw), cd(kp),
                            preferred_element_type=jnp.float32)  # (B, NH, S)
        m = jnp.max(scores, axis=-1, keepdims=True)
        e = jnp.exp(scores - m)
        denom = jnp.sum(e, axis=-1, keepdims=True)
        p = e * pl.reciprocal(denom, approx=True)              # softmax; EUP reciprocal
        weighted = jnp.einsum('bns,bsh->bnh', cd(p), cd(vp),
                              preferred_element_type=jnp.float32)  # (B, NH, H)
        ctx = jnp.sum(weighted * ms[None, :, :], axis=1)       # (B, H)

        # --- attention output projection.
        out = jnp.dot(cd(ctx), cd(wo), preferred_element_type=jnp.float32) + bo
        out_ref[...] = out.astype(out_ref.dtype)               # (B, H)

    # Single grid step: the whole batch fits trivially in VMEM at these sizes.
    # For large B, switch to grid=(cdiv(B, BB),) with BB >= 8 batch rows per step
    # and "parallel" semantics (megacore / 2-TC split on v7x).
    out = pl.pallas_call(
        kernel,
        out_shape=jax.ShapeDtypeStruct((B, H), jnp.float32),
        grid=(1,),
        in_specs=[pl.BlockSpec((B, E), lambda i: (0, 0)),
                  pl.BlockSpec((B, S, H), lambda i: (0, 0, 0)),
                  pl.BlockSpec(pack.shape, lambda i: (0, 0))],
        out_specs=pl.BlockSpec((B, H), lambda i: (0, 0)),
        compiler_params=pltpu.CompilerParams(dimension_semantics=("arbitrary",)),
    )(region_emb, text_embeddings, pack)

    # Every query row is identical (geo_context expanded before the q projection),
    # so the per-position outputs are identical: broadcast over S in the wrapper.
    return jnp.broadcast_to(out[:, None, :], (B, S, H))


def init_params(key, num_regions, E, H):
    ks = jax.random.split(key, 9)

    def lin(k, din, dout):
        kw, kb = jax.random.split(k)
        w = jax.random.normal(kw, (din, dout), jnp.float32) * (1.0 / math.sqrt(din))
        b = jax.random.normal(kb, (1, dout), jnp.float32) * 0.02
        return w, b

    emb_table = jax.random.normal(ks[0], (num_regions, E), jnp.float32)
    w1, b1 = lin(ks[1], E, 2 * E)
    w2, b2 = lin(ks[2], 2 * E, E)
    ln_g = jnp.ones((1, E), jnp.float32)
    ln_b = jnp.zeros((1, E), jnp.float32)
    wr, br = lin(ks[3], E, H)
    wq, bq = lin(ks[4], H, H)
    wk, bk = lin(ks[5], H, H)
    wv, bv = lin(ks[6], H, H)
    wo, bo = lin(ks[7], H, H)
    return dict(emb_table=emb_table, w1=w1, b1=b1, w2=w2, b2=b2,
                ln_g=ln_g, ln_b=ln_b, wr=wr, br=br,
                wq=wq, bq=bq, wk=wk, bk=bk, wv=wv, bv=bv, wo=wo, bo=bo)


def reference_forward(region_ids, text, p):
    """Pure-JAX reference mirroring the PyTorch forward (eval mode)."""
    x = p['emb_table'][region_ids]
    h = jnp.maximum(x @ p['w1'] + p['b1'], 0.0)
    y = h @ p['w2'] + p['b2']
    mu = y.mean(-1, keepdims=True)
    var = ((y - mu) ** 2).mean(-1, keepdims=True)
    geo = (y - mu) / jnp.sqrt(var + LN_EPS) * p['ln_g'] + p['ln_b']
    qv = geo @ p['wr'] + p['br']
    B, S, H = text.shape
    q = jnp.broadcast_to(qv[:, None, :], (B, S, H))
    qp = q @ p['wq'] + p['bq']
    kp = text @ p['wk'] + p['bk']
    vp = text @ p['wv'] + p['bv']
    hd = H // NUM_HEADS
    qh = qp.reshape(B, S, NUM_HEADS, hd).transpose(0, 2, 1, 3)
    kh = kp.reshape(B, S, NUM_HEADS, hd).transpose(0, 2, 1, 3)
    vh = vp.reshape(B, S, NUM_HEADS, hd).transpose(0, 2, 1, 3)
    s = jnp.einsum('bnqd,bnkd->bnqk', qh, kh) / math.sqrt(hd)
    pattn = jax.nn.softmax(s, axis=-1)
    ctx = jnp.einsum('bnqk,bnkd->bnqd', pattn, vh)
    ctx = ctx.transpose(0, 2, 1, 3).reshape(B, S, H)
    return ctx @ p['wo'] + p['bo']


if __name__ == "__main__":
    NUM_REGIONS, E, H = 10, 16, 32
    B, S = 2, 8

    key = jax.random.PRNGKey(0)
    kp_, kid, ktxt = jax.random.split(key, 3)
    params = init_params(kp_, NUM_REGIONS, E, H)
    region_ids = jax.random.randint(kid, (B,), 0, NUM_REGIONS)
    text_embeddings = jax.random.normal(ktxt, (B, S, H), jnp.float32)

    out = geographic_embedding_forward(region_ids, text_embeddings, params)
    out = jax.block_until_ready(out)

    ref = reference_forward(region_ids, text_embeddings, params)
    # Tolerance accommodates the approximate EUP reciprocal in the softmax (~2^-12 rel)
    # and the wrapper-side weight re-association.
    np.testing.assert_allclose(np.asarray(out), np.asarray(ref), rtol=2e-3, atol=2e-3)

    print("KERNEL_OK")
</pallas_src>

<mosaic_0001>
module attributes {stable_mosaic.version = 11 : i64} {
  func.func @kernel(%arg0: i32, %arg1: memref<2x16xf32, #tpu.memory_space<vmem>>, %arg2: memref<2x8x32xf32, #tpu.memory_space<vmem>>, %arg3: memref<176x128xf32, #tpu.memory_space<vmem>>, %arg4: memref<2x32xf32, #tpu.memory_space<vmem>>) attributes {dimension_semantics = [#tpu.dimension_semantics<arbitrary>], iteration_bounds = array<i64: 1>, scalar_prefetch = 0 : i64, scratch_operands = 0 : i64, tpu.core_type = #tpu.core_type<tc>, window_params = [{pipeline_mode = #tpu.pipeline_mode<synchronous>, transform_indices = @transform_0, window_bounds = array<i64: 2, 16>}, {pipeline_mode = #tpu.pipeline_mode<synchronous>, transform_indices = @transform_1, window_bounds = array<i64: 2, 8, 32>}, {pipeline_mode = #tpu.pipeline_mode<synchronous>, transform_indices = @transform_2, window_bounds = array<i64: 176, 128>}, {pipeline_mode = #tpu.pipeline_mode<synchronous>, transform_indices = @transform_3, window_bounds = array<i64: 2, 32>}]} {
    %c0 = arith.constant 0 : index
    %c0_0 = arith.constant 0 : index
    %0 = vector.load %arg3[%c0, %c0_0] : memref<176x128xf32, #tpu.memory_space<vmem>>, vector<16x32xf32>
    %c16 = arith.constant 16 : index
    %c0_1 = arith.constant 0 : index
    %1 = vector.load %arg3[%c16, %c0_1] : memref<176x128xf32, #tpu.memory_space<vmem>>, vector<1x32xf32>
    %c24 = arith.constant 24 : index
    %c0_2 = arith.constant 0 : index
    %2 = vector.load %arg3[%c24, %c0_2] : memref<176x128xf32, #tpu.memory_space<vmem>>, vector<32x16xf32>
    %c56 = arith.constant 56 : index
    %c0_3 = arith.constant 0 : index
    %3 = vector.load %arg3[%c56, %c0_3] : memref<176x128xf32, #tpu.memory_space<vmem>>, vector<1x16xf32>
    %c64 = arith.constant 64 : index
    %c0_4 = arith.constant 0 : index
    %4 = vector.load %arg3[%c64, %c0_4] : memref<176x128xf32, #tpu.memory_space<vmem>>, vector<16x32xf32>
    %c80 = arith.constant 80 : index
    %c0_5 = arith.constant 0 : index
    %5 = vector.load %arg3[%c80, %c0_5] : memref<176x128xf32, #tpu.memory_space<vmem>>, vector<1x32xf32>
    %c88 = arith.constant 88 : index
    %c0_6 = arith.constant 0 : index
    %6 = vector.load %arg3[%c88, %c0_6] : memref<176x128xf32, #tpu.memory_space<vmem>>, vector<32x64xf32>
    %c120 = arith.constant 120 : index
    %c0_7 = arith.constant 0 : index
    %7 = vector.load %arg3[%c120, %c0_7] : memref<176x128xf32, #tpu.memory_space<vmem>>, vector<1x64xf32>
    %c128 = arith.constant 128 : index
    %c0_8 = arith.constant 0 : index
    %8 = vector.load %arg3[%c128, %c0_8] : memref<176x128xf32, #tpu.memory_space<vmem>>, vector<32x32xf32>
    %c160 = arith.constant 160 : index
    %c0_9 = arith.constant 0 : index
    %9 = vector.load %arg3[%c160, %c0_9] : memref<176x128xf32, #tpu.memory_space<vmem>>, vector<1x32xf32>
    %c168 = arith.constant 168 : index
    %c0_10 = arith.constant 0 : index
    %10 = vector.load %arg3[%c168, %c0_10] : memref<176x128xf32, #tpu.memory_space<vmem>>, vector<4x32xf32>
    %c0_11 = arith.constant 0 : index
    %c0_12 = arith.constant 0 : index
    %11 = vector.load %arg1[%c0_11, %c0_12] : memref<2x16xf32, #tpu.memory_space<vmem>>, vector<2x16xf32>
    %c0_13 = arith.constant 0 : index
    %c0_14 = arith.constant 0 : index
    %c0_15 = arith.constant 0 : index
    %12 = vector.load %arg2[%c0_13, %c0_14, %c0_15] : memref<2x8x32xf32, #tpu.memory_space<vmem>>, vector<2x8x32xf32>
    %cst = arith.constant dense<0.000000e+00> : vector<2x32xf32>
    %13 = tpu.matmul %11, %0, %cst {dimension_numbers = #tpu.dot_dimension_numbers<[1], [0], [0], [1], [0, 0, 1, 1], [], []>} : vector<2x16xf32>, vector<16x32xf32>, vector<2x32xf32> -> vector<2x32xf32>
    %14 = vector.broadcast %1 : vector<1x32xf32> to vector<2x32xf32>
    %15 = arith.addf %13, %14 : vector<2x32xf32>
    %cst_16 = arith.constant 0.000000e+00 : f32
    %16 = vector.broadcast %cst_16 : f32 to vector<2x32xf32>
    %17 = arith.maximumf %15, %16 : vector<2x32xf32>
    %cst_17 = arith.constant dense<0.000000e+00> : vector<2x16xf32>
    %18 = tpu.matmul %17, %2, %cst_17 {dimension_numbers = #tpu.dot_dimension_numbers<[1], [0], [0], [1], [0, 0, 1, 1], [], []>} : vector<2x32xf32>, vector<32x16xf32>, vector<2x16xf32> -> vector<2x16xf32>
    %19 = vector.broadcast %3 : vector<1x16xf32> to vector<2x16xf32>
    %20 = arith.addf %18, %19 : vector<2x16xf32>
    %cst_18 = arith.constant dense<0.000000e+00> : vector<2xf32>
    %21 = vector.multi_reduction <add>, %20, %cst_18 [1] : vector<2x16xf32> to vector<2xf32>
    %22 = vector.shape_cast %21 : vector<2xf32> to vector<2x1xf32>
    %cst_19 = arith.constant 1.600000e+01 : f32
    %23 = vector.broadcast %cst_19 : f32 to vector<2x1xf32>
    %24 = arith.divf %22, %23 : vector<2x1xf32>
    %25 = vector.broadcast %24 : vector<2x1xf32> to vector<2x16xf32>
    %26 = arith.subf %20, %25 : vector<2x16xf32>
    %27 = arith.mulf %26, %26 : vector<2x16xf32>
    %cst_20 = arith.constant dense<0.000000e+00> : vector<2xf32>
    %28 = vector.multi_reduction <add>, %27, %cst_20 [1] : vector<2x16xf32> to vector<2xf32>
    %29 = vector.shape_cast %28 : vector<2xf32> to vector<2x1xf32>
    %cst_21 = arith.constant 1.600000e+01 : f32
    %30 = vector.broadcast %cst_21 : f32 to vector<2x1xf32>
    %31 = arith.divf %29, %30 : vector<2x1xf32>
    %32 = vector.broadcast %24 : vector<2x1xf32> to vector<2x16xf32>
    %33 = arith.subf %20, %32 : vector<2x16xf32>
    %cst_22 = arith.constant 9.99999974E-6 : f32
    %34 = vector.broadcast %cst_22 : f32 to vector<2x1xf32>
    %35 = arith.addf %31, %34 : vector<2x1xf32>
    %36 = math.rsqrt %35 : vector<2x1xf32>
    %37 = vector.broadcast %36 : vector<2x1xf32> to vector<2x16xf32>
    %38 = arith.mulf %33, %37 : vector<2x16xf32>
    %cst_23 = arith.constant dense<0.000000e+00> : vector<2x32xf32>
    %39 = tpu.matmul %38, %4, %cst_23 {dimension_numbers = #tpu.dot_dimension_numbers<[1], [0], [0], [1], [0, 0, 1, 1], [], []>} : vector<2x16xf32>, vector<16x32xf32>, vector<2x32xf32> -> vector<2x32xf32>
    %40 = vector.broadcast %5 : vector<1x32xf32> to vector<2x32xf32>
    %41 = arith.addf %39, %40 : vector<2x32xf32>
    %42 = vector.shape_cast %12 : vector<2x8x32xf32> to vector<16x32xf32>
    %cst_24 = arith.constant dense<0.000000e+00> : vector<16x64xf32>
    %43 = tpu.matmul %42, %6, %cst_24 {dimension_numbers = #tpu.dot_dimension_numbers<[1], [0], [0], [1], [0, 0, 1, 1], [], []>} : vector<16x32xf32>, vector<32x64xf32>, vector<16x64xf32> -> vector<16x64xf32>
    %44 = vector.broadcast %7 : vector<1x64xf32> to vector<16x64xf32>
    %45 = arith.addf %43, %44 : vector<16x64xf32>
    %46 = vector.extract_strided_slice %45 {offsets = [0, 0], sizes = [16, 32], strides = [1, 1]} : vector<16x64xf32> to vector<16x32xf32>
    %47 = vector.shape_cast %46 : vector<16x32xf32> to vector<2x8x32xf32>
    %48 = vector.extract_strided_slice %45 {offsets = [0, 32], sizes = [16, 32], strides = [1, 1]} : vector<16x64xf32> to vector<16x32xf32>
    %49 = vector.shape_cast %48 : vector<16x32xf32> to vector<2x8x32xf32>
    %50 = vector.shape_cast %41 : vector<2x32xf32> to vector<2x1x32xf32>
    %51 = vector.shape_cast %10 : vector<4x32xf32> to vector<1x4x32xf32>
    %52 = vector.broadcast %50 : vector<2x1x32xf32> to vector<2x4x32xf32>
    %53 = vector.broadcast %51 : vector<1x4x32xf32> to vector<2x4x32xf32>
    %54 = arith.mulf %52, %53 : vector<2x4x32xf32>
    "tpu.trace_start"() <{level = 10 : i32, message = "bnh,bsh->bns"}> : () -> ()
    %cst_25 = arith.constant dense<0.000000e+00> : vector<2x4x8xf32>
    %55 = tpu.matmul %54, %47, %cst_25 {dimension_numbers = #tpu.dot_dimension_numbers<[2], [2], [1], [1], [0, 0, 0, 1, 1, 1], [0], [0]>} : vector<2x4x32xf32>, vector<2x8x32xf32>, vector<2x4x8xf32> -> vector<2x4x8xf32>
    "tpu.trace_stop"() : () -> ()
    %cst_26 = arith.constant dense<0xFF800000> : vector<2x4xf32>
    %56 = vector.multi_reduction <maximumf>, %55, %cst_26 [2] : vector<2x4x8xf32> to vector<2x4xf32>
    %57 = vector.shape_cast %56 : vector<2x4xf32> to vector<2x4x1xf32>
    %58 = vector.broadcast %57 : vector<2x4x1xf32> to vector<2x4x8xf32>
    %59 = arith.subf %55, %58 : vector<2x4x8xf32>
    %60 = math.exp %59 : vector<2x4x8xf32>
    %cst_27 = arith.constant dense<0.000000e+00> : vector<2x4xf32>
    %61 = vector.multi_reduction <add>, %60, %cst_27 [2] : vector<2x4x8xf32> to vector<2x4xf32>
    %62 = vector.shape_cast %61 : vector<2x4xf32> to vector<2x4x1xf32>
    %63 = tpu.reciprocal %62 {approx = true} : vector<2x4x1xf32> -> vector<2x4x1xf32>
    %64 = vector.broadcast %63 : vector<2x4x1xf32> to vector<2x4x8xf32>
    %65 = arith.mulf %60, %64 : vector<2x4x8xf32>
    "tpu.trace_start"() <{level = 10 : i32, message = "bns,bsh->bnh"}> : () -> ()
    %cst_28 = arith.constant dense<0.000000e+00> : vector<2x4x32xf32>
    %66 = tpu.matmul %65, %49, %cst_28 {dimension_numbers = #tpu.dot_dimension_numbers<[2], [1], [1], [2], [0, 0, 0, 1, 1, 2], [0], [0]>} : vector<2x4x8xf32>, vector<2x8x32xf32>, vector<2x4x32xf32> -> vector<2x4x32xf32>
    "tpu.trace_stop"() : () -> ()
    %67 = vector.shape_cast %10 : vector<4x32xf32> to vector<1x4x32xf32>
    %68 = vector.broadcast %67 : vector<1x4x32xf32> to vector<2x4x32xf32>
    %69 = arith.mulf %66, %68 : vector<2x4x32xf32>
    %cst_29 = arith.constant dense<0.000000e+00> : vector<2x32xf32>
    %70 = vector.multi_reduction <add>, %69, %cst_29 [1] : vector<2x4x32xf32> to vector<2x32xf32>
    %cst_30 = arith.constant dense<0.000000e+00> : vector<2x32xf32>
    %71 = tpu.matmul %70, %8, %cst_30 {dimension_numbers = #tpu.dot_dimension_numbers<[1], [0], [0], [1], [0, 0, 1, 1], [], []>} : vector<2x32xf32>, vector<32x32xf32>, vector<2x32xf32> -> vector<2x32xf32>
    %72 = vector.broadcast %9 : vector<1x32xf32> to vector<2x32xf32>
    %73 = arith.addf %71, %72 : vector<2x32xf32>
    %c0_31 = arith.constant 0 : index
    %c0_32 = arith.constant 0 : index
    %74 = vector.load %arg4[%c0_31, %c0_32] : memref<2x32xf32, #tpu.memory_space<vmem>>, vector<2x32xf32>
    tpu.vector_store %arg4[%c0_31, %c0_32], %73 {strides = array<i32>} : memref<2x32xf32, #tpu.memory_space<vmem>>, vector<2x32xf32>,
    return
  }
  func.func @transform_0(%arg0: i32) -> (i32, i32) {
    %c0_i32 = arith.constant 0 : i32
    %c0_i32_0 = arith.constant 0 : i32
    %c0_i32_1 = arith.constant 0 : i32
    return %c0_i32, %c0_i32_0 : i32, i32
  }
  func.func @transform_1(%arg0: i32) -> (i32, i32, i32) {
    %c0_i32 = arith.constant 0 : i32
    %c0_i32_0 = arith.constant 0 : i32
    %c0_i32_1 = arith.constant 0 : i32
    %c0_i32_2 = arith.constant 0 : i32
    return %c0_i32, %c0_i32_0, %c0_i32_1 : i32, i32, i32
  }
  func.func @transform_2(%arg0: i32) -> (i32, i32) {
    %c0_i32 = arith.constant 0 : i32
    %c0_i32_0 = arith.constant 0 : i32
    %c0_i32_1 = arith.constant 0 : i32
    return %c0_i32, %c0_i32_0 : i32, i32
  }
  func.func @transform_3(%arg0: i32) -> (i32, i32) {
    %c0_i32 = arith.constant 0 : i32
    %c0_i32_0 = arith.constant 0 : i32
    %c0_i32_1 = arith.constant 0 : i32
    return %c0_i32, %c0_i32_0 : i32, i32
  }
}

</mosaic_0001>

<llo_original>
// kernel: tpu_custom_call.1
$region0: #{tpu_custom_call.1}
  #allocation0 [shape = 'u32[]', space=smem, size = 0x4, offset = 0x4, fixed_abs, tag = 'smem constant byte address 0x4 - core index']
  #allocation1 [shape = 'u32[72,128]{1,0:T(1,128)}', space=vmem, size = 0x9000, scoped, tag = 'internal scratch']
  %s0 = inlined_call_operand.hbm [shape: f32[2,16], index: 0, kind: input, shape index: {}]
  %s1 = inlined_call_operand.hbm [shape: f32[2,8,32], index: 1, kind: input, shape index: {}]
  %s2 = inlined_call_operand.hbm [shape: f32[176,128], index: 2, kind: input, shape index: {}]
  %s3 = inlined_call_operand.hbm [shape: f32[2,32], index: 3, kind: output, shape index: {}]
  %s4 = sld [smem:[#allocation0]]
  $region34: #{tpu_custom_call.1} parent=0
    _
  %s6 = ssub.s32 1, %s4
  %s7 = scalar_select 0, %s6, %s4
  $region1: #{tpu_custom_call.1} parent=0
    #allocation2 [shape = 'u8[1024]{0}', space=vmem, size = 0x400, scoped, tag = 'input window, operand 0, single buffered']
    #allocation3 [shape = 's32[1]{0}', space=sflag, size = 0x4, scoped, tag = 'scoped memory for tpu_custom_call.1']
    #allocation4 [shape = 's32[1]{0}', space=sflag, size = 0x4, scoped, tag = 'scoped memory for tpu_custom_call.1']
    #allocation5 [shape = 'u8[8192]{0}', space=vmem, size = 0x2000, scoped, tag = 'input window, operand 1, single buffered']
    #allocation6 [shape = 's32[1]{0}', space=sflag, size = 0x4, scoped, tag = 'scoped memory for tpu_custom_call.1']
    #allocation7 [shape = 'u8[90112]{0}', space=vmem, size = 0x16000, scoped, tag = 'input window, operand 2, single buffered']
    #allocation8 [shape = 'u8[1024]{0}', space=vmem, size = 0x400, scoped, tag = 'output window, operand 0, single buffered']
    %8 = vsyncpa [#allocation3], 0
    %9 = vsyncpa [#allocation6], 0
    %10 = vsyncpa [#allocation4], 0
    // Predicated region
    $region2: #{tpu_custom_call.1} parent=1 // pred_check
      _
    $region3: #{tpu_custom_call.1} parent=1 // pred_check_branch
      %12 = sbr.rel (0) target = $region5
    $region4: #{tpu_custom_call.1} parent=1 // pred_region
      %14 = vsyncadd [#allocation3], 0
      %s16 = sshll.u32 %s0, 4
      %s17 = int_to_ptr.hbm [resolvable:$true] %s16
      %s18 = sshll.u32 [#allocation2], 4
      %s19 = int_to_ptr.vmem [resolvable:$true] %s18
      %21 = dma.hbm_to_vmem [thread:$0]  %s17, 32, %s19, [#allocation3]
    $region5: #{tpu_custom_call.1} parent=1 // pred_fallthru
      _
    // Predicated region
    $region6: #{tpu_custom_call.1} parent=1 // pred_check
      _
    $region7: #{tpu_custom_call.1} parent=1 // pred_check_branch
      %23 = sbr.rel (0) target = $region9
    $region8: #{tpu_custom_call.1} parent=1 // pred_region
      %25 = vsyncadd [#allocation6], 0
      %s26 = sshll.u32 %s1, 4
      %s27 = int_to_ptr.hbm [resolvable:$true] %s26
      %s28 = sshll.u32 [#allocation5], 4
      %s29 = int_to_ptr.vmem [resolvable:$true] %s28
      %34 = dma.hbm_to_vmem [thread:$0]  %s27, 256, %s29, [#allocation6], 128, 128, 8
    $region9: #{tpu_custom_call.1} parent=1 // pred_fallthru
      _
    // Predicated region
    $region10: #{tpu_custom_call.1} parent=1 // pred_check
      _
    $region11: #{tpu_custom_call.1} parent=1 // pred_check_branch
      %36 = sbr.rel (0) target = $region13
    $region12: #{tpu_custom_call.1} parent=1 // pred_region
      %38 = vsyncadd [#allocation6], 0
      %s39 = sshll.u32 %s2, 4
      %s40 = int_to_ptr.hbm [resolvable:$true] %s39
      %s41 = sshll.u32 [#allocation7], 4
      %s42 = int_to_ptr.vmem [resolvable:$true] %s41
      %47 = dma.hbm_to_vmem [thread:$0]  %s40, 2816, %s42, [#allocation6], 128, 128, 8
    $region13: #{tpu_custom_call.1} parent=1 // pred_fallthru
      _
    // Predicated region
    $region14: #{tpu_custom_call.1} parent=1 // pred_check
      _
    $region15: #{tpu_custom_call.1} parent=1 // pred_check_branch
      %49 = sbr.rel (0) target = $region17
    $region16: #{tpu_custom_call.1} parent=1 // pred_region
      %51 = dma.done [#allocation3], 32
    $region17: #{tpu_custom_call.1} parent=1 // pred_fallthru
      _
    // Predicated region
    $region18: #{tpu_custom_call.1} parent=1 // pred_check
      _
    $region19: #{tpu_custom_call.1} parent=1 // pred_check_branch
      %53 = sbr.rel (0) target = $region21
    $region20: #{tpu_custom_call.1} parent=1 // pred_region
      %55 = dma.done [#allocation6], 256
    $region21: #{tpu_custom_call.1} parent=1 // pred_fallthru
      _
    // Predicated region
    $region22: #{tpu_custom_call.1} parent=1 // pred_check
      _
    $region23: #{tpu_custom_call.1} parent=1 // pred_check_branch
      %57 = sbr.rel (0) target = $region25
    $region24: #{tpu_custom_call.1} parent=1 // pred_region
      %59 = dma.done [#allocation6], 2816
    $region25: #{tpu_custom_call.1} parent=1 // pred_fallthru
      _
    %v60 = vld [vmem:[#allocation7] sm:$0xff]
    %v61 = vld [vmem:[#allocation7 + $0x8] sm:$0xff]
    %v62 = vld [vmem:[#allocation7 + $0x10] sm:$0x1]
    %v63 = vld [vmem:[#allocation7 + $0x18] sm:$0xff]
    %v64 = vld [vmem:[#allocation7 + $0x20] sm:$0xff]
    %v65 = vld [vmem:[#allocation7 + $0x28] sm:$0xff]
    %v66 = vld [vmem:[#allocation7 + $0x30] sm:$0xff]
    %v67 = vld [vmem:[#allocation7 + $0x38] sm:$0x1]
    %v68 = vld [vmem:[#allocation7 + $0x40] sm:$0xff]
    %v69 = vld [vmem:[#allocation7 + $0x48] sm:$0xff]
    %v70 = vld [vmem:[#allocation7 + $0x50] sm:$0x1]
    %v71 = vld [vmem:[#allocation7 + $0x58] sm:$0xff]
    %v72 = vld [vmem:[#allocation7 + $0x60] sm:$0xff]
    %v73 = vld [vmem:[#allocation7 + $0x68] sm:$0xff]
    %v74 = vld [vmem:[#allocation7 + $0x70] sm:$0xff]
    %v75 = vld [vmem:[#allocation7 + $0x78] sm:$0x1]
    %v76 = vld [vmem:[#allocation7 + $0x80] sm:$0xff]
    %v77 = vld [vmem:[#allocation7 + $0x88] sm:$0xff]
    %v78 = vld [vmem:[#allocation7 + $0x90] sm:$0xff]
    %v79 = vld [vmem:[#allocation7 + $0x98] sm:$0xff]
    %v80 = vld [vmem:[#allocation7 + $0xa0] sm:$0x1]
    %v81 = vld [vmem:[#allocation7 + $0xa8] sm:$0xf]
    %v82 = vld [vmem:[#allocation2] sm:$0x3]
    %v83 = vld [vmem:[#allocation5] sm:$0xff]
    %v84 = vld [vmem:[#allocation5 + $0x8] sm:$0xff]
    %v85 = vperm.slane %v62, 0
    %vm86 = vcmask 130048
    %v88 = vsel %vm86, %v82, 0
    %90 = vmatpush.msra.mxu0 0.0
    %91 = vmatpush.msra.mxu0 0.0
    %92 = vmatpush.msra.mxu0 0.0
    %93 = vmatpush.msra.mxu0 0.0
    %94 = vmatpush.msra.mxu0 0.0
    %95 = vmatpush.msra.mxu0 0.0
    %96 = vmatpush.msra.mxu0 0.0
    %97 = vmatpush.msra.mxu0 0.0
    %98 = vmatpush.msra.mxu0 0.0
    %99 = vmatpush.msra.mxu0 0.0
    %100 = vmatpush.msra.mxu0 0.0
    %101 = vmatpush.msra.mxu0 0.0
    %102 = vmatpush.msra.mxu0 0.0
    %103 = vmatpush.msra.mxu0 0.0
    %104 = vmatpush.msra.mxu0 %v61
    %105 = vmatpush.msra.mxu0 %v60
    %106 = vmatmul.f32.gmra.mxu0 %v88
    %v107 = vpop.f32.mrf.mxu0
    %v108 = vadd.f32 %v85, %v107
    %109 = vdwg.mxu0
    %v110 = vmax.f32 %v108, 0.0
    %v111 = vperm.slane %v67, 0
    %vm112 = vcmask 261120
    %v114 = vsel %vm112, %v110, 0
    %116 = vmatpush.msra.mxu0 0.0
    %117 = vmatpush.msra.mxu0 0.0
    %118 = vmatpush.msra.mxu0 0.0
    %119 = vmatpush.msra.mxu0 0.0
    %120 = vmatpush.msra.mxu0 0.0
    %121 = vmatpush.msra.mxu0 0.0
    %122 = vmatpush.msra.mxu0 0.0
    %123 = vmatpush.msra.mxu0 0.0
    %124 = vmatpush.msra.mxu0 0.0
    %125 = vmatpush.msra.mxu0 0.0
    %126 = vmatpush.msra.mxu0 0.0
    %127 = vmatpush.msra.mxu0 0.0
    %128 = vmatpush.msra.mxu0 %v66
    %129 = vmatpush.msra.mxu0 %v65
    %130 = vmatpush.msra.mxu0 %v64
    %131 = vmatpush.msra.mxu0 %v63
    %132 = vmatmul.f32.gmra.mxu0 %v114
    %v133 = vpop.f32.mrf.mxu0
    %v134 = vadd.f32 %v111, %v133
    %135 = vdwg.mxu0
    %vm136 = vcmask 123904
    %v137 = vsel %vm136, %v134, 0.0
    %138 = vadd.xlane.f32.xlu0 %v137
    %v139 = vpop.xlane.xlu0 %138
    %v140 = vrcp.pop 16.0
    %v141 = vmul.f32 16.0, %v140
    %v142 = vsub.f32 1.0, %v141
    %v143 = vmul.f32 %v140, %v142
    %v144 = vadd.f32 %v140, %v143
    %vm145 = vweird.f32 %v140
    %v146 = vsel %vm145, %v140, %v144
    %v147 = vmul.f32 %v139, %v146
    %v148 = vsub.f32 %v134, %v147
    %v149 = vmul.f32 %v148, %v148
    %v150 = vsel %vm136, %v149, 0.0
    %151 = vadd.xlane.f32.xlu0 %v150
    %v152 = vpop.xlane.xlu0 %151
    %v153 = vmul.f32 %v152, %v146
    %v154 = vadd.f32 %v153, 1e-05
    %v155 = vrsqrt.pop %v154
    %v156 = vmul.f32 %v155, %v154
    %v157 = vmul.f32 %v156, %v155
    %v158 = vmul.f32 0.5, %v157
    %v159 = vsub.f32 1.5, %v158
    %v160 = vmul.f32 %v155, %v159
    %vm161 = vweird.f32 %v154
    %vm162 = vweird.f32 %v155
    %vm163 = vmor %vm161, %vm162
    %v164 = vsel %vm163, %v155, %v160
    %v165 = vmul.f32 %v148, %v164
    %v166 = vperm.slane %v70, 0
    %v168 = vsel %vm86, %v165, 0
    %170 = vmatpush.msra.mxu0 0.0
    %171 = vmatpush.msra.mxu0 0.0
    %172 = vmatpush.msra.mxu0 0.0
    %173 = vmatpush.msra.mxu0 0.0
    %174 = vmatpush.msra.mxu0 0.0
    %175 = vmatpush.msra.mxu0 0.0
    %176 = vmatpush.msra.mxu0 0.0
    %177 = vmatpush.msra.mxu0 0.0
    %178 = vmatpush.msra.mxu0 0.0
    %179 = vmatpush.msra.mxu0 0.0
    %180 = vmatpush.msra.mxu0 0.0
    %181 = vmatpush.msra.mxu0 0.0
    %182 = vmatpush.msra.mxu0 0.0
    %183 = vmatpush.msra.mxu0 0.0
    %184 = vmatpush.msra.mxu0 %v69
    %185 = vmatpush.msra.mxu0 %v68
    %186 = vmatmul.f32.gmra.mxu0 %v168
    %v187 = vpop.f32.mrf.mxu0
    %v188 = vadd.f32 %v166, %v187
    %189 = vdwg.mxu0
    %v190 = vperm.slane %v75, 0
    %v192 = vsel %vm112, %v83, 0
    %v195 = vsel %vm112, %v84, 0
    %197 = vmatpush.msra.mxu0 0.0
    %198 = vmatpush.msra.mxu0 0.0
    %199 = vmatpush.msra.mxu0 0.0
    %200 = vmatpush.msra.mxu0 0.0
    %201 = vmatpush.msra.mxu0 0.0
    %202 = vmatpush.msra.mxu0 0.0
    %203 = vmatpush.msra.mxu0 0.0
    %204 = vmatpush.msra.mxu0 0.0
    %205 = vmatpush.msra.mxu0 0.0
    %206 = vmatpush.msra.mxu0 0.0
    %207 = vmatpush.msra.mxu0 0.0
    %208 = vmatpush.msra.mxu0 0.0
    %209 = vmatpush.msra.mxu0 %v74
    %210 = vmatpush.msra.mxu0 %v73
    %211 = vmatpush.msra.mxu0 %v72
    %212 = vmatpush.msra.mxu0 %v71
    %213 = vmatmul.f32.gmra.mxu0 %v192
    %v214 = vpop.f32.mrf.mxu0
    %v215 = vadd.f32 %v190, %v214
    %216 = vmatmul.f32.gmra.mxu0 %v195
    %v217 = vpop.f32.mrf.mxu0
    %v218 = vadd.f32 %v190, %v217
    %219 = vdwg.mxu0
    %v221 = vrot.slane %v188, 1
    %v222 = vperm.slane %v188, 0
    %v223 = vperm.slane %v221, 0
    %v226 = vmul.f32 %v222, %v81
    %v227 = vmul.f32 %v223, %v81
    %v229 = vsel %vm112, %v226, 0
    %v232 = vsel %vm112, %v215, 0
    %234 = vmatpush.xpose.msra.mxu0 0.0
    %235 = vmatpush.xpose.msra.mxu0 0.0
    %236 = vmatpush.xpose.msra.mxu0 0.0
    %237 = vmatpush.xpose.msra.mxu0 0.0
    %238 = vmatpush.xpose.msra.mxu0 0.0
    %239 = vmatpush.xpose.msra.mxu0 0.0
    %240 = vmatpush.xpose.msra.mxu0 0.0
    %241 = vmatpush.xpose.msra.mxu0 0.0
    %242 = vmatpush.xpose.msra.mxu0 0.0
    %243 = vmatpush.xpose.msra.mxu0 0.0
    %244 = vmatpush.xpose.msra.mxu0 0.0
    %245 = vmatpush.xpose.msra.mxu0 0.0
    %246 = vmatpush.xpose.msra.mxu0 0.0
    %247 = vmatpush.xpose.msra.mxu0 0.0
    %248 = vmatpush.xpose.msra.mxu0 0.0
    %249 = vmatpush.xpose.msra.mxu0 %v232
    %250 = vmatmul.f32.gmra.mxu0 %v229
    %v251 = vpop.f32.mrf.mxu0
    %v252 = vadd.f32 0.0, %v251
    %253 = vdwg.mxu0
    %v255 = vsel %vm112, %v227, 0
    %v258 = vsel %vm112, %v218, 0
    %260 = vmatpush.xpose.msra.mxu0 0.0
    %261 = vmatpush.xpose.msra.mxu0 0.0
    %262 = vmatpush.xpose.msra.mxu0 0.0
    %263 = vmatpush.xpose.msra.mxu0 0.0
    %264 = vmatpush.xpose.msra.mxu0 0.0
    %265 = vmatpush.xpose.msra.mxu0 0.0
    %266 = vmatpush.xpose.msra.mxu0 0.0
    %267 = vmatpush.xpose.msra.mxu0 0.0
    %268 = vmatpush.xpose.msra.mxu0 0.0
    %269 = vmatpush.xpose.msra.mxu0 0.0
    %270 = vmatpush.xpose.msra.mxu0 0.0
    %271 = vmatpush.xpose.msra.mxu0 0.0
    %272 = vmatpush.xpose.msra.mxu0 0.0
    %273 = vmatpush.xpose.msra.mxu0 0.0
    %274 = vmatpush.xpose.msra.mxu0 0.0
    %275 = vmatpush.xpose.msra.mxu0 %v258
    %276 = vmatmul.f32.gmra.mxu0 %v255
    %v277 = vpop.f32.mrf.mxu0
    %v278 = vadd.f32 0.0, %v277
    %279 = vdwg.mxu0
    %vm280 = vcmask 60416
    %v281 = vsel %vm280, %v252, -inf
    %282 = vmax.xlane.f32.xlu0 %v281
    %v283 = vpop.xlane.xlu0 %282
    %v284 = vsel %vm280, %v278, -inf
    %285 = vmax.xlane.f32.xlu0 %v284
    %v286 = vpop.xlane.xlu0 %285
    %v287 = vsub.f32 %v252, %v283
    %v288 = vsub.f32 %v278, %v286
    %v289 = vmul.f32 %v287, 1.442695
    %v290 = vpow.pop %v289
    %v291 = vmul.f32 %v288, 1.442695
    %v292 = vpow.pop %v291
    %v293 = vsel %vm280, %v290, 0.0
    %294 = vadd.xlane.f32.xlu0 %v293
    %v295 = vpop.xlane.xlu0 %294
    %v296 = vsel %vm280, %v292, 0.0
    %297 = vadd.xlane.f32.xlu0 %v296
    %v298 = vpop.xlane.xlu0 %297
    %v299 = vrcp.pop %v295
    %v300 = vrcp.pop %v298
    %v301 = vmul.f32 %v290, %v299
    %v302 = vmul.f32 %v292, %v300
    %303 = vrot.lane.b32.xlu0 %v215, 96
    %v304 = vpop.permute.xlu0 %303
    %vm306 = vcmask 64512
    %v308 = vsel %vm306, %v301, 0
    %310 = vmatpush.msra.mxu0 0.0
    %311 = vmatpush.msra.mxu0 0.0
    %312 = vmatpush.msra.mxu0 0.0
    %313 = vmatpush.msra.mxu0 0.0
    %314 = vmatpush.msra.mxu0 0.0
    %315 = vmatpush.msra.mxu0 0.0
    %316 = vmatpush.msra.mxu0 0.0
    %317 = vmatpush.msra.mxu0 0.0
    %318 = vmatpush.msra.mxu0 0.0
    %319 = vmatpush.msra.mxu0 0.0
    %320 = vmatpush.msra.mxu0 0.0
    %321 = vmatpush.msra.mxu0 0.0
    %322 = vmatpush.msra.mxu0 0.0
    %323 = vmatpush.msra.mxu0 0.0
    %324 = vmatpush.msra.mxu0 0.0
    %325 = vmatpush.msra.mxu0 %v304
    %326 = vmatmul.f32.gmra.mxu0 %v308
    %v327 = vpop.f32.mrf.mxu0
    %v328 = vadd.f32 0.0, %v327
    %329 = vdwg.mxu0
    %330 = vrot.lane.b32.xlu0 %v218, 96
    %v331 = vpop.permute.xlu0 %330
    %v334 = vsel %vm306, %v302, 0
    %336 = vmatpush.msra.mxu0 0.0
    %337 = vmatpush.msra.mxu0 0.0
    %338 = vmatpush.msra.mxu0 0.0
    %339 = vmatpush.msra.mxu0 0.0
    %340 = vmatpush.msra.mxu0 0.0
    %341 = vmatpush.msra.mxu0 0.0
    %342 = vmatpush.msra.mxu0 0.0
    %343 = vmatpush.msra.mxu0 0.0
    %344 = vmatpush.msra.mxu0 0.0
    %345 = vmatpush.msra.mxu0 0.0
    %346 = vmatpush.msra.mxu0 0.0
    %347 = vmatpush.msra.mxu0 0.0
    %348 = vmatpush.msra.mxu0 0.0
    %349 = vmatpush.msra.mxu0 0.0
    %350 = vmatpush.msra.mxu0 0.0
    %351 = vmatpush.msra.mxu0 %v331
    %352 = vmatmul.f32.gmra.mxu0 %v334
    %v353 = vpop.f32.mrf.mxu0
    %v354 = vadd.f32 0.0, %v353
    %355 = vdwg.mxu0
    %v356 = vmul.f32 %v328, %v81
    %v357 = vmul.f32 %v354, %v81
    %vm358 = vcmask 257024
    %v359 = vsel %vm358, %v356, 0.0
    %v360 = vrot.slane %v359, 4
    %v361 = vadd.f32 %v359, %v360
    %v362 = vrot.slane %v361, 2
    %v363 = vadd.f32 %v361, %v362
    %v364 = vrot.slane %v363, 1
    %v365 = vadd.f32 %v363, %v364
    %v366 = vsel %vm358, %v357, 0.0
    %v367 = vrot.slane %v366, 4
    %v368 = vadd.f32 %v366, %v367
    %v369 = vrot.slane %v368, 2
    %v370 = vadd.f32 %v368, %v369
    %v371 = vrot.slane %v370, 1
    %v372 = vadd.f32 %v370, %v371
    %v373 = vperm.slane %v80, 0
    %vm376 = vcmask 1041409
    %v377 = vsel %vm376, %v372, %v365
    %v378 = vsel %vm112, %v377, 0
    %380 = vmatpush.msra.mxu0 0.0
    %381 = vmatpush.msra.mxu0 0.0
    %382 = vmatpush.msra.mxu0 0.0
    %383 = vmatpush.msra.mxu0 0.0
    %384 = vmatpush.msra.mxu0 0.0
    %385 = vmatpush.msra.mxu0 0.0
    %386 = vmatpush.msra.mxu0 0.0
    %387 = vmatpush.msra.mxu0 0.0
    %388 = vmatpush.msra.mxu0 0.0
    %389 = vmatpush.msra.mxu0 0.0
    %390 = vmatpush.msra.mxu0 0.0
    %391 = vmatpush.msra.mxu0 0.0
    %392 = vmatpush.msra.mxu0 %v79
    %393 = vmatpush.msra.mxu0 %v78
    %394 = vmatpush.msra.mxu0 %v77
    %395 = vmatpush.msra.mxu0 %v76
    %396 = vmatmul.f32.gmra.mxu0 %v378
    %v397 = vpop.f32.mrf.mxu0
    %v398 = vadd.f32 %v373, %v397
    %399 = vdwg.mxu0
    %vm400 = vcmask 254976
    %401 = vst.msk [vmem:[#allocation8] sm:$0x3] %vm400, %v398
    // Predicated region
    $region26: #{tpu_custom_call.1} parent=1 // pred_check
      _
    $region27: #{tpu_custom_call.1} parent=1 // pred_check_branch
      %403 = sbr.rel (0) target = $region29
    $region28: #{tpu_custom_call.1} parent=1 // pred_region
      %405 = vsyncadd [#allocation4], 0
      %s407 = sshll.u32 [#allocation8], 4
      %s408 = int_to_ptr.vmem [resolvable:$true] %s407
      %s409 = sshll.u32 %s3, 4
      %s410 = int_to_ptr.hbm [resolvable:$true] %s409
      %412 = dma.vmem_to_hbm [thread:$0]  %s408, 32, %s410, [#allocation4]
    $region29: #{tpu_custom_call.1} parent=1 // pred_fallthru
      _
    // Predicated region
    $region30: #{tpu_custom_call.1} parent=1 // pred_check
      _
    $region31: #{tpu_custom_call.1} parent=1 // pred_check_branch
      %414 = sbr.rel (0) target = $region33
    $region32: #{tpu_custom_call.1} parent=1 // pred_region
      %416 = dma.done [#allocation4], 32
    $region33: #{tpu_custom_call.1} parent=1 // pred_fallthru
      _
    %417 = vsyncpa [#allocation3], 1
    %418 = vsyncpa [#allocation6], 1
    %419 = vsyncpa [#allocation4], 1

</llo_original>
